<compile_context>
chip_gen: v5e
topology: v5e:2x2
jax: 0.10.0
libtpu: 0.0.40
codegen_flags: <defaults>
</compile_context>

<pallas_src>
import functools

import jax
import jax.numpy as jnp
from jax.experimental import pallas as pl
from jax.experimental.pallas import tpu as pltpu


# --------------------------------------------------------------------------
# Small helpers
# --------------------------------------------------------------------------
def _round_up(v, m):
    return (v + m - 1) // m * m


def _vmem_capacity_bytes():
    """Per-core VMEM capacity; conservative (v7x) fallback if unqueryable."""
    try:
        info = pltpu.get_tpu_info()
        cap = getattr(info, "vmem_capacity_bytes", None)
        if cap:
            return int(cap)
    except Exception:
        pass
    return 64 * 1024 * 1024


def _vmem_limit_bytes(footprint, capacity):
    """Scoped-VMEM limit to request: footprint + margin, clamped to the chip."""
    want = max(footprint * 5 // 4 + (4 << 20), 32 << 20)
    return int(min(capacity * 7 // 8, want))


def _largest_divisor_tile(padded, preferred, align):
    """Largest multiple of `align` dividing `padded`, not exceeding `preferred`.

    `padded` is already a multiple of `align`, so `align` always qualifies.
    Choosing a divisor avoids rounding the array up to the tile size (no
    silent FLOP / HBM-traffic blowup from tile padding).
    """
    best = align
    t = align
    cap = min(padded, preferred)
    while t <= cap:
        if padded % t == 0:
            best = t
        t += align
    return best


# --------------------------------------------------------------------------
# Single linear layer: tiled (M, N, K) GEMM  y = x @ W + b  (+ optional ReLU)
# Weight is already (K, N) = pre-transposed PyTorch weight.
# --------------------------------------------------------------------------
def _linear_kernel(x_ref, w_ref, b_ref, o_ref, acc_ref, *, apply_relu):
    k = pl.program_id(2)

    @pl.when(k == 0)
    def _():
        acc_ref[...] = jnp.zeros_like(acc_ref)

    # Canonical (tm, tk) @ (tk, tn) -> (tm, tn) on the MXU, f32 accumulation.
    acc_ref[...] += jnp.dot(x_ref[...], w_ref[...],
                            preferred_element_type=jnp.float32)

    @pl.when(k == pl.num_programs(2) - 1)
    def _():
        y = acc_ref[...] + b_ref[...]          # bias is f32
        if apply_relu:
            y = jnp.maximum(y, 0.0)
        o_ref[...] = y.astype(o_ref.dtype)


def _select_linear_tiles(m_p, k_p, n_p, itemsize, capacity):
    """Prefer (512, 512, 1024); shrink while the footprint exceeds budget."""
    budget = capacity * 7 // 10
    tm_pref, tn_pref, tk_pref = 512, 512, 1024
    while True:
        tm = _largest_divisor_tile(m_p, tm_pref, 8)
        tn = _largest_divisor_tile(n_p, tn_pref, 128)
        tk = _largest_divisor_tile(k_p, tk_pref, 128)
        # 2x double-buffered x / w / out blocks + f32 accumulator + bias.
        fp = (2 * tm * tk + 2 * tk * tn + 2 * tm * tn) * itemsize \
             + tm * tn * 4 + 2 * tn * 4
        at_min = tm_pref <= 8 and tn_pref <= 128 and tk_pref <= 128
        if fp <= budget or at_min:
            return tm, tn, tk, fp
        tm_pref = max(8, tm_pref // 2)
        tn_pref = max(128, tn_pref // 2)
        tk_pref = max(128, tk_pref // 2)


def _linear_padded(xp, wp, bp, apply_relu, capacity):
    """xp: (m_p, k_p); wp: (k_p, n_p) pre-transposed; bp: (1, n_p) f32."""
    m_p, k_p = xp.shape
    n_p = wp.shape[1]
    itemsize = jnp.dtype(xp.dtype).itemsize
    tm, tn, tk, fp = _select_linear_tiles(m_p, k_p, n_p, itemsize, capacity)
    grid = (m_p // tm, n_p // tn, k_p // tk)
    kernel = functools.partial(_linear_kernel, apply_relu=apply_relu)

    return pl.pallas_call(
        kernel,
        out_shape=jax.ShapeDtypeStruct((m_p, n_p), xp.dtype),
        grid=grid,
        in_specs=[
            pl.BlockSpec((tm, tk), lambda i, j, k: (i, k)),
            pl.BlockSpec((tk, tn), lambda i, j, k: (k, j)),
            pl.BlockSpec((1, tn), lambda i, j, k: (0, j)),
        ],
        out_specs=pl.BlockSpec((tm, tn), lambda i, j, k: (i, j)),
        scratch_shapes=[pltpu.VMEM((tm, tn), jnp.float32)],
        compiler_params=pltpu.CompilerParams(
            dimension_semantics=("parallel", "parallel", "arbitrary"),
            vmem_limit_bytes=_vmem_limit_bytes(fp, capacity),
        ),
    )(xp, wp, bp)


# --------------------------------------------------------------------------
# Fused multi-layer MLP: grid = (M_tiles, L), activation resident in VMEM in
# the compute dtype; dot accumulation in f32; ReLU on all but the last layer.
# --------------------------------------------------------------------------
def _mlp_fused_kernel(x_ref, w_ref, b_ref, o_ref, act_ref):
    l = pl.program_id(1)
    n_layers = pl.num_programs(1)

    @pl.when(l == 0)
    def _():
        act_ref[...] = x_ref[...]

    # act: (tm, h), w: (h_in, h_out) pre-transposed -> (tm, h_out).
    y = jnp.dot(act_ref[...], w_ref[...],
                preferred_element_type=jnp.float32) + b_ref[...]

    @pl.when(l < n_layers - 1)
    def _():
        # dropout == identity (eval mode); then ReLU; keep compute dtype.
        act_ref[...] = jnp.maximum(y, 0.0).astype(act_ref.dtype)

    @pl.when(l == n_layers - 1)
    def _():
        o_ref[...] = y.astype(o_ref.dtype)


def _fused_footprint(tm, h_p, itemsize):
    # 2x x + 2x out + act scratch (compute dtype) + 2x weight + 2x f32 bias.
    return (5 * tm * h_p + 2 * h_p * h_p) * itemsize + 2 * h_p * 4


def _select_fused_tm(m_p, h_p, itemsize, capacity):
    """Largest tm (mult. of 8, divides m_p, <=1024) whose footprint fits."""
    budget = capacity * 7 // 10
    best = None
    t = 8
    cap = min(m_p, 1024)
    while t <= cap:
        if m_p % t == 0 and _fused_footprint(t, h_p, itemsize) <= budget:
            best = t
        t += 8
    if best is None:
        return None, None
    # Large batch is compute-bound: split M into >=2 parallel tiles so a
    # second TensorCore (v7x megacore) can be used.  Small batch stays as one
    # tile (weight-bandwidth-bound; splitting would double weight streaming).
    if m_p // best < 2 and m_p >= 512:
        alt = _largest_divisor_tile(m_p, m_p // 2, 8)
        if _fused_footprint(alt, h_p, itemsize) <= budget:
            best = alt
    return best, _fused_footprint(best, h_p, itemsize)


def _mlp_fused_padded(xp, w_stack, b_stack, tm, footprint, capacity):
    m_p, h_p = xp.shape
    n_layers = w_stack.shape[0]

    return pl.pallas_call(
        _mlp_fused_kernel,
        out_shape=jax.ShapeDtypeStruct((m_p, h_p), xp.dtype),
        grid=(m_p // tm, n_layers),
        in_specs=[
            pl.BlockSpec((tm, h_p), lambda i, l: (i, 0)),
            pl.BlockSpec((pl.Squeezed(), h_p, h_p), lambda i, l: (l, 0, 0)),
            pl.BlockSpec((pl.Squeezed(), 1, h_p), lambda i, l: (l, 0, 0)),
        ],
        out_specs=pl.BlockSpec((tm, h_p), lambda i, l: (i, 0)),
        scratch_shapes=[pltpu.VMEM((tm, h_p), xp.dtype)],
        compiler_params=pltpu.CompilerParams(
            dimension_semantics=("parallel", "arbitrary"),
            vmem_limit_bytes=_vmem_limit_bytes(footprint, capacity),
        ),
    )(xp, w_stack, b_stack)


# --------------------------------------------------------------------------
# Parameter init / one-time preparation / forward
# --------------------------------------------------------------------------
def init_projector_params(key, nhid, nlayers=1, dtype=jnp.float32):
    """Deterministic Linear(nhid, nhid) params per layer (PyTorch layout)."""
    params = []
    bound = 1.0 / float(nhid) ** 0.5
    for i in range(nlayers):
        kw, kb, key = jax.random.split(jax.random.fold_in(key, i), 3)
        w = jax.random.uniform(kw, (nhid, nhid), dtype, -bound, bound)
        b = jax.random.uniform(kb, (nhid,), dtype, -bound, bound)
        params.append((w, b))
    return params


def prepare_projector_params(params, compute_dtype=None):
    """One-time prep: transpose to (in, out), zero-pad to (8,128) multiples,
    cast weights to the compute dtype, keep biases in f32.

    Done once outside the forward path so the steady state does no re-layout.
    `compute_dtype=jnp.bfloat16` halves weight HBM traffic if accuracy permits.
    """
    nlayers = len(params)
    nhid = params[0][0].shape[0]
    h_p = _round_up(nhid, 128)
    if compute_dtype is None:
        compute_dtype = params[0][0].dtype

    w_stack = jnp.zeros((nlayers, h_p, h_p), compute_dtype)
    b_stack = jnp.zeros((nlayers, 1, h_p), jnp.float32)
    for i, (w, b) in enumerate(params):
        w_stack = w_stack.at[i, :nhid, :nhid].set(w.T.astype(compute_dtype))
        b_stack = b_stack.at[i, 0, :nhid].set(b.astype(jnp.float32))
    return {
        "nlayers": nlayers,
        "nhid": nhid,
        "h_p": h_p,
        "compute_dtype": compute_dtype,
        "w": w_stack,
        "b": b_stack,
    }


def projector_forward(x, prepared):
    """Mirrors projector.forward (eval mode: dropout == identity)."""
    nhid = prepared["nhid"]
    h_p = prepared["h_p"]
    cdt = prepared["compute_dtype"]
    nlayers = prepared["nlayers"]
    n = x.shape[0]
    assert x.shape[1] == nhid

    m_p = _round_up(n, 8)
    x_c = x if x.dtype == cdt else x.astype(cdt)
    needs_pad = (m_p != n) or (h_p != nhid)
    if needs_pad:
        xp = jnp.zeros((m_p, h_p), cdt).at[:n, :nhid].set(x_c)
    else:
        xp = x_c

    capacity = _vmem_capacity_bytes()
    w_stack, b_stack = prepared["w"], prepared["b"]

    if nlayers == 1:
        out = _linear_padded(xp, w_stack[0], b_stack[0],
                             apply_relu=False, capacity=capacity)
    else:
        itemsize = jnp.dtype(cdt).itemsize
        tm, fp = _select_fused_tm(m_p, h_p, itemsize, capacity)
        if tm is not None:
            # One kernel launch; activation stays resident in VMEM across layers.
            out = _mlp_fused_padded(xp, w_stack, b_stack, tm, fp, capacity)
        else:
            # Fallback for very large nhid: per-layer tiled GEMMs, ReLU fused.
            h = xp
            for i in range(nlayers):
                h = _linear_padded(h, w_stack[i], b_stack[i],
                                   apply_relu=(i < nlayers - 1),
                                   capacity=capacity)
            out = h

    if needs_pad:
        out = out[:n, :nhid]
    return out


# --------------------------------------------------------------------------
# Demo / self-check
# --------------------------------------------------------------------------
if __name__ == "__main__":
    key = jax.random.PRNGKey(0)
    nhid = 32
    batch = 8

    kx, kp = jax.random.split(key)
    x = jax.random.normal(kx, (batch, nhid), dtype=jnp.float32)

    # Default configuration of the module: nlayer1 = 1 (single Linear).
    params1 = init_projector_params(kp, nhid, nlayers=1)
    prep1 = prepare_projector_params(params1)
    y1 = projector_forward(x, prep1)
    jax.block_until_ready(y1)

    # Multi-layer branch (Linear -> dropout(id) -> ReLU -> ... -> Linear),
    # exercised through the fused single-kernel path.
    params2 = init_projector_params(kp, nhid, nlayers=3)
    prep2 = prepare_projector_params(params2)
    y2 = projector_forward(x, prep2)
    jax.block_until_ready(y2)

    # Cross-check against a plain-JAX reference.
    w0, b0 = params1[0]
    ref1 = x @ w0.T + b0
    assert y1.shape == ref1.shape
    assert jnp.allclose(y1, ref1, rtol=1e-4, atol=1e-4), "single-layer mismatch"

    h = x
    for i in range(len(params2) - 1):
        w, b = params2[i]
        h = jnp.maximum(h @ w.T + b, 0.0)
    wl, bl = params2[-1]
    ref2 = h @ wl.T + bl
    assert y2.shape == ref2.shape
    assert jnp.allclose(y2, ref2, rtol=1e-4, atol=1e-4), "multi-layer mismatch"

    print("KERNEL_OK")
</pallas_src>

<mosaic_0001>
module attributes {stable_mosaic.version = 11 : i64} {
  func.func @_linear_kernel(%arg0: i32, %arg1: i32, %arg2: i32, %arg3: memref<8x128xf32, #tpu.memory_space<vmem>>, %arg4: memref<128x128xf32, #tpu.memory_space<vmem>>, %arg5: memref<1x128xf32, #tpu.memory_space<vmem>>, %arg6: memref<8x128xf32, #tpu.memory_space<vmem>>, %arg7: memref<8x128xf32, #tpu.memory_space<vmem>>) attributes {dimension_semantics = [#tpu.dimension_semantics<parallel>, #tpu.dimension_semantics<parallel>, #tpu.dimension_semantics<arbitrary>], iteration_bounds = array<i64: 1, 1, 1>, scalar_prefetch = 0 : i64, scratch_operands = 1 : i64, tpu.core_type = #tpu.core_type<tc>, window_params = [{transform_indices = @transform_0, window_bounds = array<i64: 8, 128>}, {transform_indices = @transform_1, window_bounds = array<i64: 128, 128>}, {transform_indices = @transform_2, window_bounds = array<i64: 1, 128>}, {transform_indices = @transform_3, window_bounds = array<i64: 8, 128>}]} {
    %c0_i32 = arith.constant 0 : i32
    %0 = arith.cmpi eq, %arg2, %c0_i32 : i32
    %1 = arith.extui %0 : i1 to i32
    %c0_i32_0 = arith.constant 0 : i32
    %2 = arith.cmpi ne, %1, %c0_i32_0 : i32
    scf.if %2 {
      %cst_10 = arith.constant 0.000000e+00 : f32
      %12 = vector.broadcast %cst_10 : f32 to vector<8x128xf32>
      %c0_11 = arith.constant 0 : index
      %c0_12 = arith.constant 0 : index
      %13 = vector.load %arg7[%c0_11, %c0_12] : memref<8x128xf32, #tpu.memory_space<vmem>>, vector<8x128xf32>
      tpu.vector_store %arg7[%c0_11, %c0_12], %12 {strides = array<i32>} : memref<8x128xf32, #tpu.memory_space<vmem>>, vector<8x128xf32>,
    } else {
    }
    %c0 = arith.constant 0 : index
    %c0_1 = arith.constant 0 : index
    %3 = vector.load %arg7[%c0, %c0_1] : memref<8x128xf32, #tpu.memory_space<vmem>>, vector<8x128xf32>
    %c0_2 = arith.constant 0 : index
    %c0_3 = arith.constant 0 : index
    %4 = vector.load %arg3[%c0_2, %c0_3] : memref<8x128xf32, #tpu.memory_space<vmem>>, vector<8x128xf32>
    %c0_4 = arith.constant 0 : index
    %c0_5 = arith.constant 0 : index
    %5 = vector.load %arg4[%c0_4, %c0_5] : memref<128x128xf32, #tpu.memory_space<vmem>>, vector<128x128xf32>
    %cst = arith.constant dense<0.000000e+00> : vector<8x128xf32>
    %6 = tpu.matmul %4, %5, %cst {dimension_numbers = #tpu.dot_dimension_numbers<[1], [0], [0], [1], [0, 0, 1, 1], [], []>} : vector<8x128xf32>, vector<128x128xf32>, vector<8x128xf32> -> vector<8x128xf32>
    %7 = arith.addf %3, %6 : vector<8x128xf32>
    %c0_6 = arith.constant 0 : index
    %c0_7 = arith.constant 0 : index
    %8 = vector.load %arg7[%c0_6, %c0_7] : memref<8x128xf32, #tpu.memory_space<vmem>>, vector<8x128xf32>
    tpu.vector_store %arg7[%c0_6, %c0_7], %7 {strides = array<i32>} : memref<8x128xf32, #tpu.memory_space<vmem>>, vector<8x128xf32>,
    %c0_i32_8 = arith.constant 0 : i32
    %9 = arith.cmpi eq, %arg2, %c0_i32_8 : i32
    %10 = arith.extui %9 : i1 to i32
    %c0_i32_9 = arith.constant 0 : i32
    %11 = arith.cmpi ne, %10, %c0_i32_9 : i32
    scf.if %11 {
      %c0_10 = arith.constant 0 : index
      %c0_11 = arith.constant 0 : index
      %12 = vector.load %arg7[%c0_10, %c0_11] : memref<8x128xf32, #tpu.memory_space<vmem>>, vector<8x128xf32>
      %c0_12 = arith.constant 0 : index
      %c0_13 = arith.constant 0 : index
      %13 = vector.load %arg5[%c0_12, %c0_13] : memref<1x128xf32, #tpu.memory_space<vmem>>, vector<1x128xf32>
      %14 = vector.broadcast %13 : vector<1x128xf32> to vector<8x128xf32>
      %15 = arith.addf %12, %14 : vector<8x128xf32>
      %c0_14 = arith.constant 0 : index
      %c0_15 = arith.constant 0 : index
      %16 = vector.load %arg6[%c0_14, %c0_15] : memref<8x128xf32, #tpu.memory_space<vmem>>, vector<8x128xf32>
      tpu.vector_store %arg6[%c0_14, %c0_15], %15 {strides = array<i32>} : memref<8x128xf32, #tpu.memory_space<vmem>>, vector<8x128xf32>,
    } else {
    }
    return
  }
  func.func @transform_0(%arg0: i32, %arg1: i32, %arg2: i32) -> (i32, i32) {
    %c0_i32 = arith.constant 0 : i32
    return %arg0, %arg2 : i32, i32
  }
  func.func @transform_1(%arg0: i32, %arg1: i32, %arg2: i32) -> (i32, i32) {
    %c0_i32 = arith.constant 0 : i32
    return %arg2, %arg1 : i32, i32
  }
  func.func @transform_2(%arg0: i32, %arg1: i32, %arg2: i32) -> (i32, i32) {
    %c0_i32 = arith.constant 0 : i32
    %c0_i32_0 = arith.constant 0 : i32
    return %c0_i32, %arg1 : i32, i32
  }
  func.func @transform_3(%arg0: i32, %arg1: i32, %arg2: i32) -> (i32, i32) {
    %c0_i32 = arith.constant 0 : i32
    return %arg0, %arg1 : i32, i32
  }
}

</mosaic_0001>

<llo_original>
// kernel: tpu_custom_call.1
$region0: #{tpu_custom_call.1}
  #allocation0 [shape = 'u32[]', space=smem, size = 0x4, offset = 0x4, fixed_abs, tag = 'smem constant byte address 0x4 - core index']
  #allocation1 [shape = 'u32[72,128]{1,0:T(1,128)}', space=vmem, size = 0x9000, scoped, tag = 'internal scratch']
  #allocation2 [shape = 'f32[8,128]{1,0:T(8,128)}', space=vmem, size = 0x1000, scoped, tag = 'scratch operand']
  %s0 = inlined_call_operand.hbm [shape: f32[8,128], index: 0, kind: input, shape index: {}]
  %s1 = inlined_call_operand.hbm [shape: f32[128,128], index: 1, kind: input, shape index: {}]
  %s2 = inlined_call_operand.vmem [shape: f32[1,128], index: 2, kind: input, shape index: {}]
  %s3 = inlined_call_operand.hbm [shape: f32[8,128], index: 3, kind: output, shape index: {}]
  %s4 = sld [smem:[#allocation0]]
  $region38: #{tpu_custom_call.1} parent=0
    _
  %s6 = ssub.s32 1, %s4
  %s7 = scalar_select 0, %s6, %s4
  $region1: #{tpu_custom_call.1} parent=0
    #allocation3 [shape = 'u8[4096]{0}', space=vmem, size = 0x1000, scoped, tag = 'input window, operand 0, single buffered']
    #allocation4 [shape = 's32[1]{0}', space=sflag, size = 0x4, scoped, tag = 'scoped memory for tpu_custom_call.1']
    #allocation5 [shape = 's32[1]{0}', space=sflag, size = 0x4, scoped, tag = 'scoped memory for tpu_custom_call.1']
    #allocation6 [shape = 'u8[65536]{0}', space=vmem, size = 0x10000, scoped, tag = 'input window, operand 1, single buffered']
    #allocation7 [shape = 's32[1]{0}', space=sflag, size = 0x4, scoped, tag = 'scoped memory for tpu_custom_call.1']
    #allocation8 [shape = 'u8[4096]{0}', space=vmem, size = 0x1000, scoped, tag = 'output window, operand 0, single buffered']
    %8 = vsyncpa [#allocation4], 0
    %9 = vsyncpa [#allocation7], 0
    %10 = vsyncpa [#allocation5], 0
    // Predicated region
    $region2: #{tpu_custom_call.1} parent=1 // pred_check
      _
    $region3: #{tpu_custom_call.1} parent=1 // pred_check_branch
      %12 = sbr.rel (0) target = $region5
    $region4: #{tpu_custom_call.1} parent=1 // pred_region
      %14 = vsyncadd [#allocation4], 0
      %s16 = sshll.u32 %s0, 4
      %s17 = int_to_ptr.hbm [resolvable:$true] %s16
      %s18 = sshll.u32 [#allocation3], 4
      %s19 = int_to_ptr.vmem [resolvable:$true] %s18
      %21 = dma.hbm_to_vmem [thread:$0]  %s17, 128, %s19, [#allocation4]
    $region5: #{tpu_custom_call.1} parent=1 // pred_fallthru
      _
    // Predicated region
    $region6: #{tpu_custom_call.1} parent=1 // pred_check
      _
    $region7: #{tpu_custom_call.1} parent=1 // pred_check_branch
      %23 = sbr.rel (0) target = $region9
    $region8: #{tpu_custom_call.1} parent=1 // pred_region
      %25 = vsyncadd [#allocation7], 0
      %s26 = sshll.u32 %s1, 4
      %s27 = int_to_ptr.hbm [resolvable:$true] %s26
      %s28 = sshll.u32 [#allocation6], 4
      %s29 = int_to_ptr.vmem [resolvable:$true] %s28
      %34 = dma.hbm_to_vmem [thread:$0]  %s27, 2048, %s29, [#allocation7], 128, 128, 8
    $region9: #{tpu_custom_call.1} parent=1 // pred_fallthru
      _
    // Predicated region
    $region10: #{tpu_custom_call.1} parent=1 // pred_check
      _
    $region11: #{tpu_custom_call.1} parent=1 // pred_check_branch
      %36 = sbr.rel (0) target = $region13
    $region12: #{tpu_custom_call.1} parent=1 // pred_region
      _
    $region13: #{tpu_custom_call.1} parent=1 // pred_fallthru
      _
    // Predicated region
    $region14: #{tpu_custom_call.1} parent=1 // pred_check
      _
    $region15: #{tpu_custom_call.1} parent=1 // pred_check_branch
      %38 = sbr.rel (0) target = $region17
    $region16: #{tpu_custom_call.1} parent=1 // pred_region
      %40 = dma.done [#allocation4], 128
    $region17: #{tpu_custom_call.1} parent=1 // pred_fallthru
      _
    // Predicated region
    $region18: #{tpu_custom_call.1} parent=1 // pred_check
      _
    $region19: #{tpu_custom_call.1} parent=1 // pred_check_branch
      %42 = sbr.rel (0) target = $region21
    $region20: #{tpu_custom_call.1} parent=1 // pred_region
      %44 = dma.done [#allocation7], 2048
    $region21: #{tpu_custom_call.1} parent=1 // pred_fallthru
      _
    %p45 = scmp.eq.s32.totalorder 0, 0
    // Predicated region
    $region22: #{tpu_custom_call.1} parent=1 // pred_check
      %p46 = pneg %p45
    $region23: #{tpu_custom_call.1} parent=1 // pred_check_branch
      %48 = sbr.rel (%p46) target = $region25
    $region24: #{tpu_custom_call.1} parent=1 // pred_region
      %49 = vst [vmem:[#allocation2] sm:$0xff] 0.0
    $region25: #{tpu_custom_call.1} parent=1 // pred_fallthru
      _
    %v50 = vld [vmem:[#allocation2] sm:$0xff]
    %v51 = vld [vmem:[#allocation3] sm:$0xff]
    %v52 = vld [vmem:[#allocation6] sm:$0xff]
    %v53 = vld [vmem:[#allocation6 + $0x8] sm:$0xff]
    %v54 = vld [vmem:[#allocation6 + $0x10] sm:$0xff]
    %v55 = vld [vmem:[#allocation6 + $0x18] sm:$0xff]
    %v56 = vld [vmem:[#allocation6 + $0x20] sm:$0xff]
    %v57 = vld [vmem:[#allocation6 + $0x28] sm:$0xff]
    %v58 = vld [vmem:[#allocation6 + $0x30] sm:$0xff]
    %v59 = vld [vmem:[#allocation6 + $0x38] sm:$0xff]
    %v60 = vld [vmem:[#allocation6 + $0x40] sm:$0xff]
    %v61 = vld [vmem:[#allocation6 + $0x48] sm:$0xff]
    %v62 = vld [vmem:[#allocation6 + $0x50] sm:$0xff]
    %v63 = vld [vmem:[#allocation6 + $0x58] sm:$0xff]
    %v64 = vld [vmem:[#allocation6 + $0x60] sm:$0xff]
    %v65 = vld [vmem:[#allocation6 + $0x68] sm:$0xff]
    %v66 = vld [vmem:[#allocation6 + $0x70] sm:$0xff]
    %v67 = vld [vmem:[#allocation6 + $0x78] sm:$0xff]
    %68 = vmatpush.msra.mxu0 %v67
    %69 = vmatpush.msra.mxu0 %v66
    %70 = vmatpush.msra.mxu0 %v65
    %71 = vmatpush.msra.mxu0 %v64
    %72 = vmatpush.msra.mxu0 %v63
    %73 = vmatpush.msra.mxu0 %v62
    %74 = vmatpush.msra.mxu0 %v61
    %75 = vmatpush.msra.mxu0 %v60
    %76 = vmatpush.msra.mxu0 %v59
    %77 = vmatpush.msra.mxu0 %v58
    %78 = vmatpush.msra.mxu0 %v57
    %79 = vmatpush.msra.mxu0 %v56
    %80 = vmatpush.msra.mxu0 %v55
    %81 = vmatpush.msra.mxu0 %v54
    %82 = vmatpush.msra.mxu0 %v53
    %83 = vmatpush.msra.mxu0 %v52
    %84 = vmatmul.f32.gmra.mxu0 %v51
    %v85 = vpop.f32.mrf.mxu0
    %v86 = vadd.f32 0.0, %v85
    %87 = vdwg.mxu0
    %v88 = vadd.f32 %v50, %v86
    %89 = vst [vmem:[#allocation2] sm:$0xff] %v88
    // Predicated region
    $region26: #{tpu_custom_call.1} parent=1 // pred_check
      %p90 = pneg %p45
    $region27: #{tpu_custom_call.1} parent=1 // pred_check_branch
      %92 = sbr.rel (%p90) target = $region29
    $region28: #{tpu_custom_call.1} parent=1 // pred_region
      %v93 = vld [vmem:[#allocation2] sm:$0xff]
      %v94 = vld [vmem:[%s2] sm:$0x1]
      %v96 = vperm.slane %v94, 0
      %v98 = vadd.f32 %v93, %v96
      %99 = vst [vmem:[#allocation8] sm:$0xff] %v98
    $region29: #{tpu_custom_call.1} parent=1 // pred_fallthru
      _
    // Predicated region
    $region30: #{tpu_custom_call.1} parent=1 // pred_check
      _
    $region31: #{tpu_custom_call.1} parent=1 // pred_check_branch
      %101 = sbr.rel (0) target = $region33
    $region32: #{tpu_custom_call.1} parent=1 // pred_region
      %103 = vsyncadd [#allocation5], 0
      %s105 = sshll.u32 [#allocation8], 4
      %s106 = int_to_ptr.vmem [resolvable:$true] %s105
      %s107 = sshll.u32 %s3, 4
      %s108 = int_to_ptr.hbm [resolvable:$true] %s107
      %110 = dma.vmem_to_hbm [thread:$0]  %s106, 128, %s108, [#allocation5]
    $region33: #{tpu_custom_call.1} parent=1 // pred_fallthru
      _
    // Predicated region
    $region34: #{tpu_custom_call.1} parent=1 // pred_check
      _
    $region35: #{tpu_custom_call.1} parent=1 // pred_check_branch
      %112 = sbr.rel (0) target = $region37
    $region36: #{tpu_custom_call.1} parent=1 // pred_region
      %114 = dma.done [#allocation5], 128
    $region37: #{tpu_custom_call.1} parent=1 // pred_fallthru
      _
    %115 = vsyncpa [#allocation4], 1
    %116 = vsyncpa [#allocation7], 1
    %117 = vsyncpa [#allocation5], 1

</llo_original>
